<compile_context>
chip_gen: v6e
topology: v6e:2x2x1
jax: 0.10.0
libtpu: 0.0.40
codegen_flags: <defaults>
</compile_context>

<pallas_src>
import functools

import jax
import jax.numpy as jnp
import numpy as np
from jax import lax
from jax.experimental import pallas as pl
from jax.experimental.pallas import tpu as pltpu


def _round_up(x, m):
    return ((x + m - 1) // m) * m


def _vmem_capacity_bytes():
    """Physical VMEM per TensorCore (128 MiB on v5e/v6e, 64 MiB on v7x)."""
    try:
        return int(pltpu.get_tpu_info().vmem_capacity_bytes)
    except Exception:
        return 64 * 1024 * 1024      # conservative fallback: v7x per-TC size


def _pick_block_rows(n_contrast, dim, feat_bytes, has_mask_block,
                     vmem_limit_bytes):
    """Largest multiple-of-8 anchor-row tile that fits the VMEM budget.

    Accounts for every VMEM resident (not just the f32 intermediates):
      * contrast (D, NC) block, counted double-buffered (worst case / fallback),
      * (1, NC) int32 column labels,
      * double-buffered (TM, D) anchor and (TM, 1) row-label input blocks,
      * the double-buffered (TM, NC) f32 mask block on the explicit-mask path,
      * ~3 live (TM, NC) f32 intermediates of the fused softmax tail,
      * (8, 128) partial-sum output blocks plus compiler-scratch headroom.
    """
    nc_pad = _round_up(max(n_contrast, 1), 128)
    d_lanes = _round_up(max(dim, 1), 128)
    fixed = (2 * _round_up(max(dim, 1), 8) * nc_pad * feat_bytes  # contrast (worst case 2x)
             + 8 * nc_pad * 4                                     # (1, NC) i32 col labels
             + 2 * 8 * 128 * 4                                    # (8, 128) f32 outputs
             + 2 * 1024 * 1024)                                   # scratch headroom
    per_row = (3 * nc_pad * 4                  # fused softmax-tail intermediates
               + 2 * d_lanes * feat_bytes      # anchor block, double-buffered
               + 2 * 128 * 4)                  # (TM,1)->(TM,128) i32 row labels
    if has_mask_block:
        per_row += 2 * nc_pad * 4              # (TM, NC) f32 mask block, x2 buffers
    budget = int(vmem_limit_bytes * 0.8) - fixed
    tm = budget // max(per_row, 1)
    tm = max(8, min(tm, 1024))
    return int(tm // 8 * 8)


def _split_for_two_cores(n_anchor, tm):
    """Cap the row tile so the "parallel" grid has >= 2 steps: lets the two
    v7x TensorCores share the work; a single extra ~0.35us grid step is
    negligible on single-TC v5e/v6e."""
    if n_anchor <= 8:
        return n_anchor
    half = _round_up(-(-n_anchor // 2), 8)
    return max(8, min(tm, half))


def _largest_mult8_divisor(bsz, cap):
    """Largest multiple-of-8 divisor of bsz that is <= cap (bsz % 8 == 0)."""
    cap = max(8, min(cap, bsz))
    cap = cap // 8 * 8
    for t in range(cap, 7, -8):
        if bsz % t == 0:
            return t
    return 8


def _resident_spec(shape, use_vmem_space):
    """Spec for an operand whose block never changes across the row grid."""
    if use_vmem_space:
        # Whole array placed in VMEM once, single buffer (halves the footprint
        # of the largest resident operand vs. default double-buffering).
        return pl.BlockSpec(memory_space=pltpu.MemorySpace.VMEM)
    # Fallback: full-extent block with a constant index map (double-buffered).
    return pl.BlockSpec(shape, lambda i: (0,) * len(shape))


def _run_pallas(kernel, out_shape, grid, in_specs_fn, out_spec, cparams, args):
    """Try the single-buffered VMEM-resident specs first; fall back to the
    known-good blocked constant-index-map specs if that lowering is rejected."""
    last_exc = None
    for use_vmem_space in (True, False):
        try:
            fn = pl.pallas_call(
                kernel,
                out_shape=out_shape,
                grid=grid,
                in_specs=in_specs_fn(use_vmem_space),
                out_specs=out_spec,
                compiler_params=cparams)
            return fn(*args)
        except Exception as exc:      # pragma: no cover - lowering fallback
            last_exc = exc
    raise last_exc


def _finish_tile(logits, positive, not_self, row_valid, o_ref, *, temp_scale):
    """Fused tail: stable masked log-softmax statistics + per-tile loss sum.

    log_prob is never materialized:
        sum_pos(log_prob) = sum_pos(logits - m) - n_pos * log(denom)
    and the masks are consumed as selects, not f32 multiplies.
    """
    logits_max = jnp.max(logits, axis=1, keepdims=True)
    shifted = logits - logits_max                       # detach() is a no-op in fwd

    denom = jnp.sum(jnp.where(not_self, jnp.exp(shifted), 0.0),
                    axis=1, keepdims=True)              # (TM, 1)
    if positive.dtype == jnp.bool_:                     # labels / SimCLR path
        pos_sum = jnp.sum(jnp.where(positive, shifted, 0.0),
                          axis=1, keepdims=True)        # (TM, 1)
        pos_cnt = jnp.sum(jnp.where(positive, 1.0, 0.0),
                          axis=1, keepdims=True)        # (TM, 1)
    else:                                               # explicit float mask path
        pos_sum = jnp.sum(positive * shifted, axis=1, keepdims=True)
        pos_cnt = jnp.sum(positive, axis=1, keepdims=True)

    num = pos_sum - pos_cnt * jnp.log(denom)
    mean_log_prob_pos = num * pl.reciprocal(pos_cnt)    # exact; only (TM, 1)
    per_row = (-temp_scale) * mean_log_prob_pos
    per_row = jnp.where(row_valid, per_row, 0.0)        # drop padded rows
    tile_sum = jnp.sum(per_row, keepdims=True)          # (1, 1)
    # Lane-dense (8, 128) partial-sum block: no masked (1,1) store, no revisited
    # scalar output across the "parallel" row axis.
    o_ref[...] = jnp.broadcast_to(tile_sum, o_ref.shape)


def _supcon_labels_kernel(row_lab_ref, col_lab_ref, anchor_ref, contrast_ref,
                          o_ref, *, inv_temperature, temp_scale, block_rows,
                          n_anchor):
    row_start = pl.program_id(0) * block_rows

    # Fold 1/temperature into the small (TM, D) anchor tile: TM*D multiplies
    # that hide under the MXU push instead of a full (TM, NC) VALU pass.
    a = anchor_ref[...] * inv_temperature
    # Contrast is pre-transposed to (D, NC) in the wrapper: plain A @ B, no
    # per-step relayout of the resident block, lane-dense even for small D.
    logits = jnp.dot(a, contrast_ref[...], preferred_element_type=jnp.float32)

    nc = logits.shape[1]
    # Broadcast compares of a (TM,1) row vector vs a (1,NC) column iota: no
    # full-tile int32 iota materialization.
    row_ids = row_start + lax.broadcasted_iota(jnp.int32, (block_rows, 1), 0)
    col_ids = lax.broadcasted_iota(jnp.int32, (1, nc), 1)
    not_self = row_ids != col_ids                               # logits_mask
    positive = jnp.logical_and(row_lab_ref[...] == col_lab_ref[...], not_self)
    row_valid = row_ids < n_anchor

    _finish_tile(logits, positive, not_self, row_valid, o_ref,
                 temp_scale=temp_scale)


def _supcon_mask_kernel(pmask_ref, anchor_ref, contrast_ref, o_ref, *,
                        inv_temperature, temp_scale, block_rows, n_anchor):
    row_start = pl.program_id(0) * block_rows

    a = anchor_ref[...] * inv_temperature
    logits = jnp.dot(a, contrast_ref[...], preferred_element_type=jnp.float32)

    nc = logits.shape[1]
    row_ids = row_start + lax.broadcasted_iota(jnp.int32, (block_rows, 1), 0)
    col_ids = lax.broadcasted_iota(jnp.int32, (1, nc), 1)
    not_self = row_ids != col_ids
    # Keep the user mask as float weights (it may be non-binary / asymmetric);
    # the self-contrast entries are removed with a select, not a f32 multiply.
    pos_w = jnp.where(not_self, pmask_ref[...].astype(jnp.float32), 0.0)
    row_valid = row_ids < n_anchor

    _finish_tile(logits, pos_w, not_self, row_valid, o_ref,
                 temp_scale=temp_scale)


def supcon_loss(features, labels=None, mask=None, *, temperature=0.07,
                contrast_mode="all", base_temperature=0.07, block_rows=None):
    """JAX/Pallas port of SupConLoss.forward.

    features: [bsz, n_views, dim] (higher-rank trailing dims are flattened)
    labels:   optional [bsz] integer class ids
    mask:     optional [bsz, bsz] float mask (may be asymmetric / weighted)
    """
    if features.ndim < 3:
        raise ValueError("`features` needs to be [bsz, n_views, ...]")
    if features.ndim > 3:
        features = features.reshape(features.shape[0], features.shape[1], -1)
    bsz, n_views, dim = features.shape

    if labels is not None and mask is not None:
        raise ValueError("Cannot define both `labels` and `mask`")

    contrast_count = n_views
    # Single O(N*D) view-major copy (== torch.cat(torch.unbind(f, 1), 0)).
    contrast_feature = jnp.reshape(
        jnp.transpose(features, (1, 0, 2)), (contrast_count * bsz, dim))

    if contrast_mode == "one":
        anchor_feature = features[:, 0]
        anchor_count = 1
    elif contrast_mode == "all":
        anchor_feature = contrast_feature
        anchor_count = contrast_count
    else:
        raise ValueError(f"Unknown mode: {contrast_mode}")

    n_anchor = anchor_count * bsz
    n_contrast = contrast_count * bsz
    # One wrapper-side transpose so the kernel computes A(M,K) @ C_T(K,N) in the
    # MXU's natural layout and the big resident block stays lane-dense.
    contrast_t = contrast_feature.T                      # (dim, n_contrast)

    feat_bytes = jnp.dtype(features.dtype).itemsize
    vmem_cap = _vmem_capacity_bytes()
    vmem_limit = max(32 * 1024 * 1024, (vmem_cap * 3) // 4)

    inv_temperature = float(1.0 / temperature)
    temp_scale = float(temperature / base_temperature)

    has_mask = mask is not None
    tm_budget = _pick_block_rows(n_contrast, dim, feat_bytes, has_mask,
                                 vmem_limit)

    mask_arr = None
    mask_spec = None
    if not has_mask:
        if block_rows is None:
            block_rows = _split_for_two_cores(n_anchor, tm_budget)
        block_rows = int(block_rows)
        if block_rows >= n_anchor:
            block_rows = n_anchor                        # full-extent single tile
        else:
            block_rows = max(8, (block_rows // 8) * 8)   # (8, .) tiling constraint
    else:
        mask = jnp.asarray(mask).astype(jnp.float32)
        requested = None if block_rows is None else int(block_rows)
        if bsz % 8 == 0:
            # Column-tiled (bsz, NC) mask streamed with a modulo row index_map:
            # HBM traffic is O(bsz*N) instead of O(N^2).
            cap = _split_for_two_cores(n_anchor, tm_budget)
            if requested is not None:
                cap = min(cap, requested)
            block_rows = _largest_mult8_divisor(bsz, max(cap, 8))
            blocks_per_bsz = bsz // block_rows
            mask_arr = jnp.tile(mask, (1, contrast_count))       # (bsz, NC)
            mask_spec = pl.BlockSpec(
                (block_rows, n_contrast),
                lambda i: (i % blocks_per_bsz, 0))
        else:
            # TODO(synk): avoid materializing the repeated (n_anchor, n_contrast)
            # mask when bsz is not a multiple of 8 (needs a gathered mask fetch).
            block_rows = (requested if requested is not None
                          else _split_for_two_cores(n_anchor, tm_budget))
            if block_rows >= n_anchor:
                block_rows = n_anchor
            else:
                block_rows = max(8, (block_rows // 8) * 8)
            mask_arr = jnp.tile(mask, (anchor_count, contrast_count))
            mask_spec = pl.BlockSpec((block_rows, n_contrast),
                                     lambda i: (i, 0))

    grid_rows = -(-n_anchor // block_rows)

    anchor_spec = pl.BlockSpec((block_rows, dim), lambda i: (i, 0))
    out_spec = pl.BlockSpec((8, 128), lambda i: (i, 0))
    out_shape = jax.ShapeDtypeStruct((grid_rows * 8, 128), jnp.float32)
    cparams = pltpu.CompilerParams(
        dimension_semantics=("parallel",),
        vmem_limit_bytes=int(vmem_limit))

    # TODO(synk): for very large n_contrast, add a second "arbitrary" grid axis
    # over contrast columns with online-softmax running stats (flash-style) so
    # VMEM is bounded by (TM, NC_TILE) rather than NC.

    if not has_mask:
        if labels is None:
            # SimCLR default: mask = eye(bsz)  <=>  "same sample index".
            base_labels = jnp.arange(bsz, dtype=jnp.int32)
        else:
            labels = jnp.asarray(labels).reshape(-1)
            if labels.shape[0] != bsz:
                raise ValueError("Num of labels does not match num of features")
            base_labels = labels.astype(jnp.int32)
        # View-major concat => global row/col r has label base_labels[r % bsz].
        col_labels = jnp.tile(base_labels, contrast_count).reshape(1, n_contrast)
        if contrast_mode == "one":
            row_labels = base_labels.reshape(n_anchor, 1)
        else:
            row_labels = jnp.tile(base_labels, anchor_count).reshape(n_anchor, 1)

        kernel = functools.partial(
            _supcon_labels_kernel, inv_temperature=inv_temperature,
            temp_scale=temp_scale, block_rows=block_rows, n_anchor=n_anchor)

        def in_specs_fn(use_vmem_space):
            return [
                pl.BlockSpec((block_rows, 1), lambda i: (i, 0)),       # row labels
                _resident_spec((1, n_contrast), use_vmem_space),       # col labels
                anchor_spec,
                _resident_spec((dim, n_contrast), use_vmem_space),     # contrast^T
            ]

        out = _run_pallas(kernel, out_shape, (grid_rows,), in_specs_fn,
                          out_spec, cparams,
                          (row_labels, col_labels, anchor_feature, contrast_t))
    else:
        kernel = functools.partial(
            _supcon_mask_kernel, inv_temperature=inv_temperature,
            temp_scale=temp_scale, block_rows=block_rows, n_anchor=n_anchor)

        def in_specs_fn(use_vmem_space):
            return [
                mask_spec,
                anchor_spec,
                _resident_spec((dim, n_contrast), use_vmem_space),     # contrast^T
            ]

        out = _run_pallas(kernel, out_shape, (grid_rows,), in_specs_fn,
                          out_spec, cparams,
                          (mask_arr, anchor_feature, contrast_t))

    # Per-tile partial sums live in rows 0, 8, 16, ...; mean over all anchors
    # (== loss.view(anchor_count, batch_size).mean()).
    return jnp.sum(out[::8, 0]) / n_anchor


def _supcon_loss_ref(features, labels=None, mask=None, *, temperature=0.07,
                     contrast_mode="all", base_temperature=0.07):
    """Pure-JAX reference mirroring the PyTorch SupConLoss.forward exactly."""
    bsz, n_views, _ = features.shape
    if labels is None and mask is None:
        mask = jnp.eye(bsz, dtype=jnp.float32)
    elif labels is not None:
        labels = jnp.asarray(labels).reshape(-1, 1)
        mask = (labels == labels.T).astype(jnp.float32)
    else:
        mask = jnp.asarray(mask).astype(jnp.float32)

    contrast_count = n_views
    contrast_feature = jnp.concatenate(
        [features[:, v] for v in range(contrast_count)], axis=0)
    if contrast_mode == "one":
        anchor_feature = features[:, 0]
        anchor_count = 1
    else:
        anchor_feature = contrast_feature
        anchor_count = contrast_count

    adc = jnp.matmul(anchor_feature, contrast_feature.T) / temperature
    logits = adc - jnp.max(adc, axis=1, keepdims=True)
    mask = jnp.tile(mask, (anchor_count, contrast_count))
    n_anchor = anchor_count * bsz
    logits_mask = jnp.ones_like(mask).at[
        jnp.arange(n_anchor), jnp.arange(n_anchor)].set(0.0)
    mask = mask * logits_mask
    exp_logits = jnp.exp(logits) * logits_mask
    log_prob = logits - jnp.log(exp_logits.sum(1, keepdims=True))
    mean_log_prob_pos = (mask * log_prob).sum(1) / mask.sum(1)
    loss = -(temperature / base_temperature) * mean_log_prob_pos
    return loss.reshape(anchor_count, bsz).mean()


if __name__ == "__main__":
    key = jax.random.PRNGKey(0)
    k1, k2, k3, k4, k5 = jax.random.split(key, 5)

    # 1) Supervised path (labels, contrast_mode='all').
    bsz, n_views, dim = 8, 2, 32
    features = jax.random.normal(k1, (bsz, n_views, dim), dtype=jnp.float32)
    features = features / jnp.linalg.norm(features, axis=-1, keepdims=True)
    labels = jax.random.randint(k2, (bsz,), 0, 4)

    loss = jax.block_until_ready(supcon_loss(features, labels=labels))
    ref = jax.block_until_ready(_supcon_loss_ref(features, labels=labels))
    np.testing.assert_allclose(np.asarray(loss), np.asarray(ref),
                               rtol=2e-4, atol=1e-5)

    # 2) Unsupervised SimCLR path (mask defaults to identity).
    loss_u = jax.block_until_ready(supcon_loss(features))
    ref_u = jax.block_until_ready(_supcon_loss_ref(features))
    np.testing.assert_allclose(np.asarray(loss_u), np.asarray(ref_u),
                               rtol=2e-4, atol=1e-5)

    # 3) Tiled + padded-last-tile path (n_anchor=24, block_rows=16 -> 2 tiles).
    bsz2 = 12
    feats2 = jax.random.normal(k3, (bsz2, n_views, dim), dtype=jnp.float32)
    feats2 = feats2 / jnp.linalg.norm(feats2, axis=-1, keepdims=True)
    labels2 = jax.random.randint(k2, (bsz2,), 0, 3)
    loss2 = jax.block_until_ready(
        supcon_loss(feats2, labels=labels2, block_rows=16))
    ref2 = jax.block_until_ready(_supcon_loss_ref(feats2, labels=labels2))
    np.testing.assert_allclose(np.asarray(loss2), np.asarray(ref2),
                               rtol=2e-4, atol=1e-5)

    # 4) Explicit-mask path (column-tiled (bsz, NC) mask + modulo row index_map).
    bsz3, dim3 = 16, 64
    feats3 = jax.random.normal(k4, (bsz3, n_views, dim3), dtype=jnp.float32)
    feats3 = feats3 / jnp.linalg.norm(feats3, axis=-1, keepdims=True)
    labels3 = jax.random.randint(k5, (bsz3,), 0, 5)
    mask3 = (labels3[:, None] == labels3[None, :]).astype(jnp.float32)
    loss3 = jax.block_until_ready(supcon_loss(feats3, mask=mask3))
    ref3 = jax.block_until_ready(_supcon_loss_ref(feats3, mask=mask3))
    np.testing.assert_allclose(np.asarray(loss3), np.asarray(ref3),
                               rtol=2e-4, atol=1e-5)

    # 5) contrast_mode='one'.
    loss_one = jax.block_until_ready(
        supcon_loss(features, labels=labels, contrast_mode="one"))
    ref_one = jax.block_until_ready(
        _supcon_loss_ref(features, labels=labels, contrast_mode="one"))
    np.testing.assert_allclose(np.asarray(loss_one), np.asarray(ref_one),
                               rtol=2e-4, atol=1e-5)

    print("KERNEL_OK")
</pallas_src>

<mosaic_0001>
module attributes {stable_mosaic.version = 11 : i64} {
  func.func @_supcon_labels_kernel(%arg0: i32, %arg1: memref<8x1xi32, #tpu.memory_space<vmem>>, %arg2: memref<1x16xi32, #tpu.memory_space<vmem>>, %arg3: memref<8x32xf32, #tpu.memory_space<vmem>>, %arg4: memref<32x16xf32, #tpu.memory_space<vmem>>, %arg5: memref<8x128xf32, #tpu.memory_space<vmem>>) attributes {dimension_semantics = [#tpu.dimension_semantics<parallel>], iteration_bounds = array<i64: 2>, scalar_prefetch = 0 : i64, scratch_operands = 0 : i64, tpu.core_type = #tpu.core_type<tc>, window_params = [{transform_indices = @transform_0, window_bounds = array<i64: 8, 1>}, {pipeline_mode = #tpu.pipeline_mode<synchronous>, transform_indices = @transform_1, window_bounds = array<i64: 1, 16>}, {transform_indices = @transform_2, window_bounds = array<i64: 8, 32>}, {pipeline_mode = #tpu.pipeline_mode<synchronous>, transform_indices = @transform_3, window_bounds = array<i64: 32, 16>}, {transform_indices = @transform_4, window_bounds = array<i64: 8, 128>}]} {
    %c8_i32 = arith.constant 8 : i32
    %0 = arith.muli %arg0, %c8_i32 : i32
    %c0 = arith.constant 0 : index
    %c0_0 = arith.constant 0 : index
    %1 = vector.load %arg3[%c0, %c0_0] : memref<8x32xf32, #tpu.memory_space<vmem>>, vector<8x32xf32>
    %cst = arith.constant 14.2857141 : f32
    %2 = vector.broadcast %cst : f32 to vector<8x32xf32>
    %3 = arith.mulf %1, %2 : vector<8x32xf32>
    %c0_1 = arith.constant 0 : index
    %c0_2 = arith.constant 0 : index
    %4 = vector.load %arg4[%c0_1, %c0_2] : memref<32x16xf32, #tpu.memory_space<vmem>>, vector<32x16xf32>
    %cst_3 = arith.constant dense<0.000000e+00> : vector<8x16xf32>
    %5 = tpu.matmul %3, %4, %cst_3 {dimension_numbers = #tpu.dot_dimension_numbers<[1], [0], [0], [1], [0, 0, 1, 1], [], []>} : vector<8x32xf32>, vector<32x16xf32>, vector<8x16xf32> -> vector<8x16xf32>
    %6 = tpu.iota {dimensions = array<i32: 0>} : vector<8x1xi32>
    %7 = vector.broadcast %0 : i32 to vector<8x1xi32>
    %8 = arith.addi %7, %6 : vector<8x1xi32>
    %9 = tpu.iota {dimensions = array<i32: 1>} : vector<1x16xi32>
    %10 = vector.broadcast %8 : vector<8x1xi32> to vector<8x16xi32>
    %11 = vector.broadcast %9 : vector<1x16xi32> to vector<8x16xi32>
    %12 = arith.cmpi ne, %10, %11 : vector<8x16xi32>
    %c0_4 = arith.constant 0 : index
    %c0_5 = arith.constant 0 : index
    %13 = vector.load %arg1[%c0_4, %c0_5] : memref<8x1xi32, #tpu.memory_space<vmem>>, vector<8x1xi32>
    %c0_6 = arith.constant 0 : index
    %c0_7 = arith.constant 0 : index
    %14 = vector.load %arg2[%c0_6, %c0_7] : memref<1x16xi32, #tpu.memory_space<vmem>>, vector<1x16xi32>
    %15 = vector.broadcast %13 : vector<8x1xi32> to vector<8x16xi32>
    %16 = vector.broadcast %14 : vector<1x16xi32> to vector<8x16xi32>
    %17 = arith.cmpi eq, %15, %16 : vector<8x16xi32>
    %18 = arith.andi %17, %12 : vector<8x16xi1>
    %c16_i32 = arith.constant 16 : i32
    %19 = vector.broadcast %c16_i32 : i32 to vector<8x1xi32>
    %20 = arith.cmpi slt, %8, %19 : vector<8x1xi32>
    %cst_8 = arith.constant dense<0xFF800000> : vector<8xf32>
    %21 = vector.multi_reduction <maximumf>, %5, %cst_8 [1] : vector<8x16xf32> to vector<8xf32>
    %22 = vector.shape_cast %21 : vector<8xf32> to vector<8x1xf32>
    %23 = vector.broadcast %22 : vector<8x1xf32> to vector<8x16xf32>
    %24 = arith.subf %5, %23 : vector<8x16xf32>
    %25 = math.exp %24 : vector<8x16xf32>
    %cst_9 = arith.constant 0.000000e+00 : f32
    %26 = vector.broadcast %cst_9 : f32 to vector<8x16xf32>
    %27 = arith.select %12, %25, %26 : vector<8x16xi1>, vector<8x16xf32>
    %cst_10 = arith.constant dense<0.000000e+00> : vector<8xf32>
    %28 = vector.multi_reduction <add>, %27, %cst_10 [1] : vector<8x16xf32> to vector<8xf32>
    %29 = vector.shape_cast %28 : vector<8xf32> to vector<8x1xf32>
    %cst_11 = arith.constant 0.000000e+00 : f32
    %30 = vector.broadcast %cst_11 : f32 to vector<8x16xf32>
    %31 = arith.select %18, %24, %30 : vector<8x16xi1>, vector<8x16xf32>
    %cst_12 = arith.constant dense<0.000000e+00> : vector<8xf32>
    %32 = vector.multi_reduction <add>, %31, %cst_12 [1] : vector<8x16xf32> to vector<8xf32>
    %33 = vector.shape_cast %32 : vector<8xf32> to vector<8x1xf32>
    %cst_13 = arith.constant 1.000000e+00 : f32
    %cst_14 = arith.constant 0.000000e+00 : f32
    %34 = vector.broadcast %cst_13 : f32 to vector<8x16xf32>
    %35 = vector.broadcast %cst_14 : f32 to vector<8x16xf32>
    %36 = arith.select %18, %34, %35 : vector<8x16xi1>, vector<8x16xf32>
    %cst_15 = arith.constant dense<0.000000e+00> : vector<8xf32>
    %37 = vector.multi_reduction <add>, %36, %cst_15 [1] : vector<8x16xf32> to vector<8xf32>
    %38 = vector.shape_cast %37 : vector<8xf32> to vector<8x1xf32>
    %39 = math.log %29 : vector<8x1xf32>
    %40 = arith.mulf %38, %39 : vector<8x1xf32>
    %41 = arith.subf %33, %40 : vector<8x1xf32>
    %42 = tpu.reciprocal %38 : vector<8x1xf32> -> vector<8x1xf32>
    %43 = arith.mulf %41, %42 : vector<8x1xf32>
    %cst_16 = arith.constant -1.000000e+00 : f32
    %44 = vector.broadcast %cst_16 : f32 to vector<8x1xf32>
    %45 = arith.mulf %44, %43 : vector<8x1xf32>
    %cst_17 = arith.constant 0.000000e+00 : f32
    %46 = vector.broadcast %cst_17 : f32 to vector<8x1xf32>
    %47 = arith.select %20, %45, %46 : vector<8x1xi1>, vector<8x1xf32>
    %48 = vector.shape_cast %47 : vector<8x1xf32> to vector<1x8x1xf32>
    %cst_18 = arith.constant dense<0.000000e+00> : vector<1xf32>
    %49 = vector.multi_reduction <add>, %48, %cst_18 [1, 2] : vector<1x8x1xf32> to vector<1xf32>
    %50 = vector.shape_cast %49 : vector<1xf32> to vector<1x1x1xf32>
    %51 = vector.extract %50[0, 0, 0] : f32 from vector<1x1x1xf32>
    %52 = vector.broadcast %51 : f32 to vector<1x1xf32>
    %53 = vector.shape_cast %52 : vector<1x1xf32> to vector<1x1xf32>
    %54 = vector.broadcast %53 : vector<1x1xf32> to vector<8x128xf32>
    %c0_19 = arith.constant 0 : index
    %c0_20 = arith.constant 0 : index
    %55 = vector.load %arg5[%c0_19, %c0_20] : memref<8x128xf32, #tpu.memory_space<vmem>>, vector<8x128xf32>
    tpu.vector_store %arg5[%c0_19, %c0_20], %54 {strides = array<i32>} : memref<8x128xf32, #tpu.memory_space<vmem>>, vector<8x128xf32>,
    return
  }
  func.func @transform_0(%arg0: i32) -> (i32, i32) {
    %c0_i32 = arith.constant 0 : i32
    %c0_i32_0 = arith.constant 0 : i32
    return %arg0, %c0_i32 : i32, i32
  }
  func.func @transform_1(%arg0: i32) -> (i32, i32) {
    %c0_i32 = arith.constant 0 : i32
    %c0_i32_0 = arith.constant 0 : i32
    %c0_i32_1 = arith.constant 0 : i32
    return %c0_i32, %c0_i32_0 : i32, i32
  }
  func.func @transform_2(%arg0: i32) -> (i32, i32) {
    %c0_i32 = arith.constant 0 : i32
    %c0_i32_0 = arith.constant 0 : i32
    return %arg0, %c0_i32 : i32, i32
  }
  func.func @transform_3(%arg0: i32) -> (i32, i32) {
    %c0_i32 = arith.constant 0 : i32
    %c0_i32_0 = arith.constant 0 : i32
    %c0_i32_1 = arith.constant 0 : i32
    return %c0_i32, %c0_i32_0 : i32, i32
  }
  func.func @transform_4(%arg0: i32) -> (i32, i32) {
    %c0_i32 = arith.constant 0 : i32
    %c0_i32_0 = arith.constant 0 : i32
    return %arg0, %c0_i32 : i32, i32
  }
}

module attributes {stable_mosaic.version = 11 : i64} {
  func.func @_supcon_labels_kernel(%arg0: i32, %arg1: memref<8x1xi32, #tpu.memory_space<vmem>>, %arg2: memref<1x16xi32, #tpu.memory_space<vmem>>, %arg3: memref<8x32xf32, #tpu.memory_space<vmem>>, %arg4: memref<32x16xf32, #tpu.memory_space<vmem>>, %arg5: memref<8x128xf32, #tpu.memory_space<vmem>>) attributes {dimension_semantics = [#tpu.dimension_semantics<parallel>], iteration_bounds = array<i64: 2>, scalar_prefetch = 0 : i64, scratch_operands = 0 : i64, tpu.core_type = #tpu.core_type<tc>, window_params = [{transform_indices = @transform_0, window_bounds = array<i64: 8, 1>}, {pipeline_mode = #tpu.pipeline_mode<synchronous>, transform_indices = @transform_1, window_bounds = array<i64: 1, 16>}, {transform_indices = @transform_2, window_bounds = array<i64: 8, 32>}, {pipeline_mode = #tpu.pipeline_mode<synchronous>, transform_indices = @transform_3, window_bounds = array<i64: 32, 16>}, {transform_indices = @transform_4, window_bounds = array<i64: 8, 128>}]} {
    %c8_i32 = arith.constant 8 : i32
    %0 = arith.muli %arg0, %c8_i32 : i32
    %c0 = arith.constant 0 : index
    %c0_0 = arith.constant 0 : index
    %1 = vector.load %arg3[%c0, %c0_0] : memref<8x32xf32, #tpu.memory_space<vmem>>, vector<8x32xf32>
    %cst = arith.constant 14.2857141 : f32
    %2 = vector.broadcast %cst : f32 to vector<8x32xf32>
    %3 = arith.mulf %1, %2 : vector<8x32xf32>
    %c0_1 = arith.constant 0 : index
    %c0_2 = arith.constant 0 : index
    %4 = vector.load %arg4[%c0_1, %c0_2] : memref<32x16xf32, #tpu.memory_space<vmem>>, vector<32x16xf32>
    %cst_3 = arith.constant dense<0.000000e+00> : vector<8x16xf32>
    %5 = tpu.matmul %3, %4, %cst_3 {dimension_numbers = #tpu.dot_dimension_numbers<[1], [0], [0], [1], [0, 0, 1, 1], [], []>} : vector<8x32xf32>, vector<32x16xf32>, vector<8x16xf32> -> vector<8x16xf32>
    %6 = tpu.iota {dimensions = array<i32: 0>} : vector<8x1xi32>
    %7 = vector.broadcast %0 : i32 to vector<8x1xi32>
    %8 = arith.addi %7, %6 : vector<8x1xi32>
    %9 = tpu.iota {dimensions = array<i32: 1>} : vector<1x16xi32>
    %10 = vector.broadcast %8 : vector<8x1xi32> to vector<8x16xi32>
    %11 = vector.broadcast %9 : vector<1x16xi32> to vector<8x16xi32>
    %12 = arith.cmpi ne, %10, %11 : vector<8x16xi32>
    %c0_4 = arith.constant 0 : index
    %c0_5 = arith.constant 0 : index
    %13 = vector.load %arg1[%c0_4, %c0_5] : memref<8x1xi32, #tpu.memory_space<vmem>>, vector<8x1xi32>
    %c0_6 = arith.constant 0 : index
    %c0_7 = arith.constant 0 : index
    %14 = vector.load %arg2[%c0_6, %c0_7] : memref<1x16xi32, #tpu.memory_space<vmem>>, vector<1x16xi32>
    %15 = vector.broadcast %13 : vector<8x1xi32> to vector<8x16xi32>
    %16 = vector.broadcast %14 : vector<1x16xi32> to vector<8x16xi32>
    %17 = arith.cmpi eq, %15, %16 : vector<8x16xi32>
    %18 = arith.andi %17, %12 : vector<8x16xi1>
    %c16_i32 = arith.constant 16 : i32
    %19 = vector.broadcast %c16_i32 : i32 to vector<8x1xi32>
    %20 = arith.cmpi slt, %8, %19 : vector<8x1xi32>
    %cst_8 = arith.constant dense<0xFF800000> : vector<8xf32>
    %21 = vector.multi_reduction <maximumf>, %5, %cst_8 [1] : vector<8x16xf32> to vector<8xf32>
    %22 = vector.shape_cast %21 : vector<8xf32> to vector<8x1xf32>
    %23 = vector.broadcast %22 : vector<8x1xf32> to vector<8x16xf32>
    %24 = arith.subf %5, %23 : vector<8x16xf32>
    %25 = math.exp %24 : vector<8x16xf32>
    %cst_9 = arith.constant 0.000000e+00 : f32
    %26 = vector.broadcast %cst_9 : f32 to vector<8x16xf32>
    %27 = arith.select %12, %25, %26 : vector<8x16xi1>, vector<8x16xf32>
    %cst_10 = arith.constant dense<0.000000e+00> : vector<8xf32>
    %28 = vector.multi_reduction <add>, %27, %cst_10 [1] : vector<8x16xf32> to vector<8xf32>
    %29 = vector.shape_cast %28 : vector<8xf32> to vector<8x1xf32>
    %cst_11 = arith.constant 0.000000e+00 : f32
    %30 = vector.broadcast %cst_11 : f32 to vector<8x16xf32>
    %31 = arith.select %18, %24, %30 : vector<8x16xi1>, vector<8x16xf32>
    %cst_12 = arith.constant dense<0.000000e+00> : vector<8xf32>
    %32 = vector.multi_reduction <add>, %31, %cst_12 [1] : vector<8x16xf32> to vector<8xf32>
    %33 = vector.shape_cast %32 : vector<8xf32> to vector<8x1xf32>
    %cst_13 = arith.constant 1.000000e+00 : f32
    %cst_14 = arith.constant 0.000000e+00 : f32
    %34 = vector.broadcast %cst_13 : f32 to vector<8x16xf32>
    %35 = vector.broadcast %cst_14 : f32 to vector<8x16xf32>
    %36 = arith.select %18, %34, %35 : vector<8x16xi1>, vector<8x16xf32>
    %cst_15 = arith.constant dense<0.000000e+00> : vector<8xf32>
    %37 = vector.multi_reduction <add>, %36, %cst_15 [1] : vector<8x16xf32> to vector<8xf32>
    %38 = vector.shape_cast %37 : vector<8xf32> to vector<8x1xf32>
    %39 = math.log %29 : vector<8x1xf32>
    %40 = arith.mulf %38, %39 : vector<8x1xf32>
    %41 = arith.subf %33, %40 : vector<8x1xf32>
    %42 = tpu.reciprocal %38 : vector<8x1xf32> -> vector<8x1xf32>
    %43 = arith.mulf %41, %42 : vector<8x1xf32>
    %cst_16 = arith.constant -1.000000e+00 : f32
    %44 = vector.broadcast %cst_16 : f32 to vector<8x1xf32>
    %45 = arith.mulf %44, %43 : vector<8x1xf32>
    %cst_17 = arith.constant 0.000000e+00 : f32
    %46 = vector.broadcast %cst_17 : f32 to vector<8x1xf32>
    %47 = arith.select %20, %45, %46 : vector<8x1xi1>, vector<8x1xf32>
    %48 = vector.shape_cast %47 : vector<8x1xf32> to vector<1x8x1xf32>
    %cst_18 = arith.constant dense<0.000000e+00> : vector<1xf32>
    %49 = vector.multi_reduction <add>, %48, %cst_18 [1, 2] : vector<1x8x1xf32> to vector<1xf32>
    %50 = vector.shape_cast %49 : vector<1xf32> to vector<1x1x1xf32>
    %51 = vector.extract %50[0, 0, 0] : f32 from vector<1x1x1xf32>
    %52 = vector.broadcast %51 : f32 to vector<1x1xf32>
    %53 = vector.shape_cast %52 : vector<1x1xf32> to vector<1x1xf32>
    %54 = vector.broadcast %53 : vector<1x1xf32> to vector<8x128xf32>
    %c0_19 = arith.constant 0 : index
    %c0_20 = arith.constant 0 : index
    %55 = vector.load %arg5[%c0_19, %c0_20] : memref<8x128xf32, #tpu.memory_space<vmem>>, vector<8x128xf32>
    tpu.vector_store %arg5[%c0_19, %c0_20], %54 {strides = array<i32>} : memref<8x128xf32, #tpu.memory_space<vmem>>, vector<8x128xf32>,
    return
  }
  func.func @transform_0(%arg0: i32) -> (i32, i32) {
    %c0_i32 = arith.constant 0 : i32
    %c0_i32_0 = arith.constant 0 : i32
    return %arg0, %c0_i32 : i32, i32
  }
  func.func @transform_1(%arg0: i32) -> (i32, i32) {
    %c0_i32 = arith.constant 0 : i32
    %c0_i32_0 = arith.constant 0 : i32
    %c0_i32_1 = arith.constant 0 : i32
    return %c0_i32, %c0_i32_0 : i32, i32
  }
  func.func @transform_2(%arg0: i32) -> (i32, i32) {
    %c0_i32 = arith.constant 0 : i32
    %c0_i32_0 = arith.constant 0 : i32
    return %arg0, %c0_i32 : i32, i32
  }
  func.func @transform_3(%arg0: i32) -> (i32, i32) {
    %c0_i32 = arith.constant 0 : i32
    %c0_i32_0 = arith.constant 0 : i32
    %c0_i32_1 = arith.constant 0 : i32
    return %c0_i32, %c0_i32_0 : i32, i32
  }
  func.func @transform_4(%arg0: i32) -> (i32, i32) {
    %c0_i32 = arith.constant 0 : i32
    %c0_i32_0 = arith.constant 0 : i32
    return %arg0, %c0_i32 : i32, i32
  }
}

</mosaic_0001>

<llo_original>
// kernel: tpu_custom_call.1
$region0: #{tpu_custom_call.1}
  #allocation0 [shape = 'u32[]', space=smem, size = 0x4, offset = 0x4, fixed_abs, tag = 'smem constant byte address 0x4 - core index']
  #allocation1 [shape = 'u32[144,128]{1,0:T(1,128)}', space=vmem, size = 0x12000, scoped, tag = 'internal scratch']
  %s0 = inlined_call_operand.vmem [shape: s32[16,1], index: 0, kind: input, shape index: {}]
  %s1 = inlined_call_operand.vmem [shape: s32[1,16], index: 1, kind: input, shape index: {}]
  %s2 = inlined_call_operand.vmem [shape: f32[16,32], index: 2, kind: input, shape index: {}]
  %s3 = inlined_call_operand.vmem [shape: f32[32,16], index: 3, kind: input, shape index: {}]
  %s4 = inlined_call_operand.hbm [shape: f32[16,128], index: 4, kind: output, shape index: {}]
  %s5 = sld [smem:[#allocation0]]
  $region49: #{tpu_custom_call.1} parent=0
    _
  %s7 = ssub.s32 1, %s5
  %s8 = scalar_select 0, %s7, %s5
  $region1: #{tpu_custom_call.1} parent=0
    #allocation2 [shape = 'u8[8192]{0}', space=vmem, size = 0x2000, scoped, tag = 'output window, operand 0']
    #allocation3 [shape = 's32[2]{0}', space=sflag, size = 0x8, scoped, tag = 'scoped memory for tpu_custom_call.1']
    %9 = vsyncpa [#allocation3], 0
    %s10 = scalar_lea.sflag [#allocation3], 1
    %11 = vsyncpa %s10, 0
    loop: start=0, step=1, limit=4
    $region2: #{tpu_custom_call.1} parent=1 // loop_pre_header
      _
    $region3: #{tpu_custom_call.1} parent=1 // loop_header
      %s13 = sphi 0, %s17
      %p14 = scmp.ge.s32.totalorder %s13, 4
      %s23 = sphi 0, %s25
      %s26 = sphi 0, %s23
      %s27 = sphi 0, %s26
      %s43 = sphi 0, %s27
      %s47 = sphi 0, %s47
      %s49 = sphi 0, %s47
      %s50 = sphi 0, %s49
      %s64 = sphi 0, %s50
      %s70 = sphi 0, %s72
      %s73 = sphi 0, %s70
      %s74 = sphi 0, %s73
      %s90 = sphi 0, %s74
      %s94 = sphi 0, %s94
      %s96 = sphi 0, %s94
      %s97 = sphi 0, %s96
      %s111 = sphi 0, %s97
      %s117 = sphi 0, %s119
      %s120 = sphi 0, %s117
      %s121 = sphi 0, %s120
      %s137 = sphi 0, %s121
    $region4: #{tpu_custom_call.1} parent=1 // loop_header_branch
      %16 = sbr.rel (%p14) target = $region8
    $region5: #{tpu_custom_call.1} parent=1 // loop_body
      %s18 = ssub.s32 %s13, 1
      %s19 = ssub.s32 %s13, 2
      %s20 = sadd.s32 %s13, 1
      %s21 = ssub.s32 %s13, %s20
      %p22 = scmp.eq.s32.totalorder %s21, 0
      %s24 = sadd.s32 %s23, 1
      %s25 = scalar_select %p22, %s23, %s24
      %p28 = pneg %p22
      %p29 = scmp.eq.s32.totalorder %s13, 1
      %p30 = por %p28, %p29
      %p31 = scmp.ne.s32.totalorder %s23, %s26
      %p32 = scmp.eq.s32.totalorder %s13, 0
      %p33 = por %p31, %p32
      %p34 = scmp.ne.s32.totalorder %s23, %s26
      %p35 = scmp.eq.s32.totalorder %s18, 1
      %p36 = por %p34, %p35
      %p37 = scmp.ne.s32.totalorder %s26, %s27
      %p38 = scmp.eq.s32.totalorder %s18, 0
      %p39 = por %p37, %p38
      %p40 = scmp.ne.s32.totalorder %s26, %s27
      %p41 = scmp.eq.s32.totalorder %s19, 1
      %p42 = por %p40, %p41
      %p44 = scmp.ne.s32.totalorder %s27, %s43
      %p45 = scmp.eq.s32.totalorder %s19, 0
      %p46 = por %p44, %p45
      %s48 = sadd.s32 %s47, 1
      %p51 = scmp.eq.s32.totalorder %s13, 1
      %p52 = scmp.ne.s32.totalorder %s47, %s49
      %p53 = scmp.eq.s32.totalorder %s13, 0
      %p54 = por %p52, %p53
      %p55 = scmp.ne.s32.totalorder %s47, %s49
      %p56 = scmp.eq.s32.totalorder %s18, 1
      %p57 = por %p55, %p56
      %p58 = scmp.ne.s32.totalorder %s49, %s50
      %p59 = scmp.eq.s32.totalorder %s18, 0
      %p60 = por %p58, %p59
      %p61 = scmp.ne.s32.totalorder %s49, %s50
      %p62 = scmp.eq.s32.totalorder %s19, 1
      %p63 = por %p61, %p62
      %p65 = scmp.ne.s32.totalorder %s50, %s64
      %p66 = scmp.eq.s32.totalorder %s19, 0
      %p67 = por %p65, %p66
      %s68 = ssub.s32 %s13, %s20
      %p69 = scmp.eq.s32.totalorder %s68, 0
      %s71 = sadd.s32 %s70, 1
      %s72 = scalar_select %p69, %s70, %s71
      %p75 = pneg %p69
      %p76 = scmp.eq.s32.totalorder %s13, 1
      %p77 = por %p75, %p76
      %p78 = scmp.ne.s32.totalorder %s70, %s73
      %p79 = scmp.eq.s32.totalorder %s13, 0
      %p80 = por %p78, %p79
      %p81 = scmp.ne.s32.totalorder %s70, %s73
      %p82 = scmp.eq.s32.totalorder %s18, 1
      %p83 = por %p81, %p82
      %p84 = scmp.ne.s32.totalorder %s73, %s74
      %p85 = scmp.eq.s32.totalorder %s18, 0
      %p86 = por %p84, %p85
      %p87 = scmp.ne.s32.totalorder %s73, %s74
      %p88 = scmp.eq.s32.totalorder %s19, 1
      %p89 = por %p87, %p88
      %p91 = scmp.ne.s32.totalorder %s74, %s90
      %p92 = scmp.eq.s32.totalorder %s19, 0
      %p93 = por %p91, %p92
      %s95 = sadd.s32 %s94, 1
      %p98 = scmp.eq.s32.totalorder %s13, 1
      %p99 = scmp.ne.s32.totalorder %s94, %s96
      %p100 = scmp.eq.s32.totalorder %s13, 0
      %p101 = por %p99, %p100
      %p102 = scmp.ne.s32.totalorder %s94, %s96
      %p103 = scmp.eq.s32.totalorder %s18, 1
      %p104 = por %p102, %p103
      %p105 = scmp.ne.s32.totalorder %s96, %s97
      %p106 = scmp.eq.s32.totalorder %s18, 0
      %p107 = por %p105, %p106
      %p108 = scmp.ne.s32.totalorder %s96, %s97
      %p109 = scmp.eq.s32.totalorder %s19, 1
      %p110 = por %p108, %p109
      %p112 = scmp.ne.s32.totalorder %s97, %s111
      %p113 = scmp.eq.s32.totalorder %s19, 0
      %p114 = por %p112, %p113
      %s115 = ssub.s32 %s13, %s20
      %p116 = scmp.eq.s32.totalorder %s115, 0
      %s118 = sadd.s32 %s117, 1
      %s119 = scalar_select %p116, %s117, %s118
      %p122 = pneg %p116
      %p123 = scmp.eq.s32.totalorder %s13, 1
      %p124 = por %p122, %p123
      %p125 = scmp.ne.s32.totalorder %s117, %s120
      %p126 = scmp.eq.s32.totalorder %s13, 0
      %p127 = por %p125, %p126
      %p128 = scmp.ne.s32.totalorder %s117, %s120
      %p129 = scmp.eq.s32.totalorder %s18, 1
      %p130 = por %p128, %p129
      %p131 = scmp.ne.s32.totalorder %s120, %s121
      %p132 = scmp.eq.s32.totalorder %s18, 0
      %p133 = por %p131, %p132
      %p134 = scmp.ne.s32.totalorder %s120, %s121
      %p135 = scmp.eq.s32.totalorder %s19, 1
      %p136 = por %p134, %p135
      %p138 = scmp.ne.s32.totalorder %s121, %s137
      %p139 = scmp.eq.s32.totalorder %s19, 0
      %p140 = por %p138, %p139
      %p141 = scmp.le.s32.totalorder 1, %s13
      %p142 = scmp.lt.s32.totalorder %s13, 3
      %p143 = pnand %p141, %p142
      %p144 = pneg %p143
      // Predicated region
      $region9: #{tpu_custom_call.1} parent=5 // pred_check
        _
      $region10: #{tpu_custom_call.1} parent=5 // pred_check_branch
        %146 = sbr.rel (%p143) target = $region12
      $region11: #{tpu_custom_call.1} parent=5 // pred_region
        %s147 = ssub.s32 %s13, 1
        // Predicated region
        $region13: #{tpu_custom_call.1} parent=11 // pred_check
          %p148 = pneg %p60
        $region14: #{tpu_custom_call.1} parent=11 // pred_check_branch
          %150 = sbr.rel (%p148) target = $region16
        $region15: #{tpu_custom_call.1} parent=11 // pred_region
          _
        $region16: #{tpu_custom_call.1} parent=11 // pred_fallthru
          _
        // Predicated region
        $region17: #{tpu_custom_call.1} parent=11 // pred_check
          %p151 = pneg %p107
        $region18: #{tpu_custom_call.1} parent=11 // pred_check_branch
          %153 = sbr.rel (%p151) target = $region20
        $region19: #{tpu_custom_call.1} parent=11 // pred_region
          _
        $region20: #{tpu_custom_call.1} parent=11 // pred_fallthru
          _
      $region12: #{tpu_custom_call.1} parent=5 // pred_fallthru
        _
      %p154 = scmp.lt.s32.totalorder %s13, 2
      // Predicated region
      $region21: #{tpu_custom_call.1} parent=5 // pred_check
        %p155 = pneg %p154
      $region22: #{tpu_custom_call.1} parent=5 // pred_check_branch
        %157 = sbr.rel (%p155) target = $region24
      $region23: #{tpu_custom_call.1} parent=5 // pred_region
        // Predicated region
        $region25: #{tpu_custom_call.1} parent=23 // pred_check
          %p158 = pneg %p33
        $region26: #{tpu_custom_call.1} parent=23 // pred_check_branch
          %160 = sbr.rel (%p158) target = $region28
        $region27: #{tpu_custom_call.1} parent=23 // pred_region
          %p161 = scmp.lt.s32.totalorder %s13, 1
          %s162 = scalar_select %p161, %s13, 1
          %s163 = smul.addr %s162, 8
          %s164 = scalar_lea.vmem %s0, %s163
        $region28: #{tpu_custom_call.1} parent=23 // pred_fallthru
          _
        // Predicated region
        $region29: #{tpu_custom_call.1} parent=23 // pred_check
          %p165 = pneg %p80
        $region30: #{tpu_custom_call.1} parent=23 // pred_check_branch
          %167 = sbr.rel (%p165) target = $region32
        $region31: #{tpu_custom_call.1} parent=23 // pred_region
          %p168 = scmp.lt.s32.totalorder %s13, 1
          %s169 = scalar_select %p168, %s13, 1
          %s170 = smul.addr %s169, 8
          %s171 = scalar_lea.vmem %s2, %s170
        $region32: #{tpu_custom_call.1} parent=23 // pred_fallthru
          _
      $region24: #{tpu_custom_call.1} parent=5 // pred_fallthru
        _
      %p172 = scmp.le.s32.totalorder 1, %s13
      %p173 = scmp.lt.s32.totalorder %s13, 3
      %p174 = pnand %p172, %p173
      %p175 = pneg %p174
      // Predicated region
      $region33: #{tpu_custom_call.1} parent=5 // pred_check
        _
      $region34: #{tpu_custom_call.1} parent=5 // pred_check_branch
        %177 = sbr.rel (%p174) target = $region36
      $region35: #{tpu_custom_call.1} parent=5 // pred_region
        %s178 = ssub.s32 %s13, 1
        %p179 = scmp.lt.s32.totalorder %s18, 1
        %s180 = scalar_select %p179, %s18, 1
        %s181 = smul.addr %s180, 8
        %s182 = scalar_lea.vmem %s0, %s181
        %p183 = pneg %p39
        %p184 = pneg %p36
        %p185 = pneg %p60
        %p186 = pneg %p57
        %p187 = scmp.lt.s32.totalorder %s18, 1
        %s188 = scalar_select %p187, %s18, 1
        %s189 = smul.addr %s188, 8
        %s190 = scalar_lea.vmem %s2, %s189
        %p191 = pneg %p86
        %p192 = pneg %p83
        %p193 = pneg %p107
        %p194 = pneg %p104
        %p195 = pneg %p133
        %p196 = pneg %p130
        %s197 = sand.u32 %s120, 1
        %s198 = scalar_lea.sflag [#allocation3], %s197
        %s199 = sand.u32 %s120, 1
        %s200 = smul.addr %s199, 8
        %s201 = scalar_lea.vmem [#allocation2], %s200
        %p202 = scmp.lt.s32.totalorder %s18, 1
        %s203 = scalar_select %p202, %s18, 1
        %s204 = smul.addr %s203, 8
        %s205 = scalar_lea.vmem %s0, %s204
        %p206 = scmp.lt.s32.totalorder %s18, 1
        %s207 = scalar_select %p206, %s18, 1
        %s208 = smul.addr %s207, 8
        %s209 = scalar_lea.vmem %s2, %s208
        %s210 = smul.u32 %s18, 8
        %v211 = vld [vmem:[%s209] sm:$0xff]
        %v212 = vmul.f32 %v211, 14.285714
        %v213 = vld [vmem:[%s3] sm:$0xff]
        %v214 = vld [vmem:[%s3 + $0x8] sm:$0xff]
        %v215 = vld [vmem:[%s3 + $0x10] sm:$0xff]
        %v216 = vld [vmem:[%s3 + $0x18] sm:$0xff]
        %vm217 = vcmask 261120
        %v219 = vsel %vm217, %v212, 0
        %221 = vmatprep.subr.mxu0 0.0
        %222 = vmatpush1.msra.mxu0 0.0
        %223 = vmatprep.subr.mxu0 0.0
        %224 = vmatpush1.msra.mxu0 0.0
        %225 = vmatprep.subr.mxu0 0.0
        %226 = vmatpush1.msra.mxu0 0.0
        %227 = vmatprep.subr.mxu0 0.0
        %228 = vmatpush1.msra.mxu0 0.0
        %229 = vmatprep.subr.mxu0 0.0
        %230 = vmatpush1.msra.mxu0 0.0
        %231 = vmatprep.subr.mxu0 0.0
        %232 = vmatpush1.msra.mxu0 0.0
        %233 = vmatprep.subr.mxu0 0.0
        %234 = vmatpush1.msra.mxu0 0.0
        %235 = vmatprep.subr.mxu0 0.0
        %236 = vmatpush1.msra.mxu0 0.0
        %237 = vmatprep.subr.mxu0 0.0
        %238 = vmatpush1.msra.mxu0 0.0
        %239 = vmatprep.subr.mxu0 0.0
        %240 = vmatpush1.msra.mxu0 0.0
        %241 = vmatprep.subr.mxu0 0.0
        %242 = vmatpush1.msra.mxu0 0.0
        %243 = vmatprep.subr.mxu0 0.0
        %244 = vmatpush1.msra.mxu0 0.0
        %245 = vmatprep.subr.mxu0 0.0
        %246 = vmatpush1.msra.mxu0 %v216
        %247 = vmatprep.subr.mxu0 0.0
        %248 = vmatpush1.msra.mxu0 %v215
        %249 = vmatprep.subr.mxu0 0.0
        %250 = vmatpush1.msra.mxu0 %v214
        %251 = vmatprep.subr.mxu0 0.0
        %252 = vmatpush1.msra.mxu0 %v213
        %253 = vmatprep.subr.mxu0 0.0
        %254 = vmatpush2.msra.mxu0 0.0
        %255 = vmatprep.subr.mxu0 0.0
        %256 = vmatpush2.msra.mxu0 0.0
        %257 = vmatprep.subr.mxu0 0.0
        %258 = vmatpush2.msra.mxu0 0.0
        %259 = vmatprep.subr.mxu0 0.0
        %260 = vmatpush2.msra.mxu0 0.0
        %261 = vmatprep.subr.mxu0 0.0
        %262 = vmatpush2.msra.mxu0 0.0
        %263 = vmatprep.subr.mxu0 0.0
        %264 = vmatpush2.msra.mxu0 0.0
        %265 = vmatprep.subr.mxu0 0.0
        %266 = vmatpush2.msra.mxu0 0.0
        %267 = vmatprep.subr.mxu0 0.0
        %268 = vmatpush2.msra.mxu0 0.0
        %269 = vmatprep.subr.mxu0 0.0
        %270 = vmatpush2.msra.mxu0 0.0
        %271 = vmatprep.subr.mxu0 0.0
        %272 = vmatpush2.msra.mxu0 0.0
        %273 = vmatprep.subr.mxu0 0.0
        %274 = vmatpush2.msra.mxu0 0.0
        %275 = vmatprep.subr.mxu0 0.0
        %276 = vmatpush2.msra.mxu0 0.0
        %277 = vmatprep.subr.mxu0 0.0
        %278 = vmatpush2.msra.mxu0 0.0
        %279 = vmatprep.subr.mxu0 0.0
        %280 = vmatpush2.msra.mxu0 0.0
        %281 = vmatprep.subr.mxu0 0.0
        %282 = vmatpush2.msra.mxu0 0.0
        %283 = vmatprep.subr.mxu0 0.0
        %284 = vmatpush2.msra.mxu0 0.0
        %285 = vmatprep.mubr.f32.mxu0 0.0
        %286 = vmatmul.mubr.f32.gmra.mxu0 %v219
        %v287 = vpop.f32.mrf.mxu0
        %v288 = vadd.f32 0.0, %v287
        %v289 = vpop.f32.mrf.mxu0
        %290 = vdwg.mxu0
        %v291 = vlaneseq
        %v292 = vshrl.u32 %v291, 7
        %v293 = vstv %s210
        %v294 = vadd.s32 %v293, %v292
        %v295 = vlaneseq
        %v296 = vand.u32 %v295, 127
        %vm297 = vcmp.ne.s32.totalorder %v294, %v296
        %v298 = vld [vmem:[%s205] sm:$0xff]
        %v299 = vld [vmem:[%s1] sm:$0x1]
        %300 = vset.pattern.permute.xlu0 0
        %301 = vperm.xlu0 %300, %v298
        %v302 = vpop.permute.xlu0 %301
        %v303 = vlaneseq
        %v304 = vshrl.u32 %v303, 7
        %v305 = vsub.s32 0, %v304
        %v306 = vrot.slane %v299, %v305
        %vm307 = vcmp.eq.s32.totalorder %v302, %v306
        %vm308 = vmand %vm307, %vm297
        %vm309 = vcmp.lt.s32.totalorder %v294, 16
        %vm310 = vcmask 130048
        %v311 = vsel %vm310, %v288, -inf
        %312 = vmax.xlane.f32.xlu0 %v311
        %v313 = vpop.xlane.xlu0 %312
        %v314 = vsub.f32 %v288, %v313
        %v315 = vmul.f32 %v314, 1.442695
        %v316 = vpow.pop %v315
        %v317 = vsel %vm297, %v316, 0.0
        %v318 = vsel %vm310, %v317, 0.0
        %319 = vadd.xlane.f32.xlu0 %v318
        %v320 = vpop.xlane.xlu0 %319
        %v321 = vsel %vm308, %v314, 0.0
        %v322 = vsel %vm310, %v321, 0.0
        %323 = vadd.xlane.f32.xlu0 %v322
        %v324 = vpop.xlane.xlu0 %323
        %v325 = vsel %vm308, 1.0, 0.0
        %v326 = vsel %vm310, %v325, 0.0
        %327 = vadd.xlane.f32.xlu0 %v326
        %v328 = vpop.xlane.xlu0 %327
        %v329 = vlog2.pop %v320
        %v330 = vmul.f32 %v329, 0.6931472
        %v331 = vmul.f32 %v328, %v330
        %v332 = vsub.f32 %v324, %v331
        %v333 = vrcp.pop %v328
        %v334 = vmul.f32 %v332, %v333
        %v335 = vmul.f32 %v334, -1.0
        %v336 = vsel %vm309, %v335, 0.0
        %vm337 = vcmask 7168
        %v338 = vsel %vm337, %v336, 0.0
        %339 = vadd.xlane.f32.xlu0 %v338
        %v340 = vpop.xlane.xlu0 %339
        %v341 = vrot.slane %v340, 4
        %v342 = vadd.f32 %v340, %v341
        %v343 = vrot.slane %v342, 2
        %v344 = vadd.f32 %v342, %v343
        %v345 = vrot.slane %v344, 1
        %v346 = vadd.f32 %v344, %v345
        %s347 = vtos %v346
        %v348 = vstv %s347
        %349 = vst [vmem:[%s201] sm:$0xff] %v348
        %s350 = sand.u32 %s120, 1
        %s351 = scalar_lea.sflag [#allocation3], %s350
        %s352 = sand.u32 %s120, 1
        %s353 = smul.addr %s352, 8
        %s354 = scalar_lea.vmem [#allocation2], %s353
        // Predicated region
        $region37: #{tpu_custom_call.1} parent=35 // pred_check
          %p355 = pneg %p130
        $region38: #{tpu_custom_call.1} parent=35 // pred_check_branch
          %357 = sbr.rel (%p355) target = $region40
        $region39: #{tpu_custom_call.1} parent=35 // pred_region
          %s359 = ssub.s32 128, 128
          %360 = vsyncadd %s351, %s359
          %s361 = smul.addr %s18, 128
          %s362 = scalar_lea.hbm %s4, %s361
          %s364 = sshll.u32 %s354, 4
          %s365 = int_to_ptr.vmem [resolvable:$true] %s364
          %367 = dma.vmem_to_hbm [thread:$0]  %s365, 128, %s362, %s351
        $region40: #{tpu_custom_call.1} parent=35 // pred_fallthru
          _
      $region36: #{tpu_custom_call.1} parent=5 // pred_fallthru
        _
      %p368 = scmp.le.s32.totalorder 2, %s13
      // Predicated region
      $region41: #{tpu_custom_call.1} parent=5 // pred_check
        %p369 = pneg %p368
      $region42: #{tpu_custom_call.1} parent=5 // pred_check_branch
        %371 = sbr.rel (%p369) target = $region44
      $region43: #{tpu_custom_call.1} parent=5 // pred_region
        %s372 = ssub.s32 %s13, 2
        // Predicated region
        $region45: #{tpu_custom_call.1} parent=43 // pred_check
          %p373 = pneg %p136
        $region46: #{tpu_custom_call.1} parent=43 // pred_check_branch
          %375 = sbr.rel (%p373) target = $region48
        $region47: #{tpu_custom_call.1} parent=43 // pred_region
          %s376 = sand.u32 %s121, 1
          %s377 = scalar_lea.sflag [#allocation3], %s376
          %s378 = sand.u32 %s121, 1
          %s379 = smul.addr %s378, 8
          %s380 = scalar_lea.vmem [#allocation2], %s379
          %381 = dma.done %s377, 128
        $region48: #{tpu_custom_call.1} parent=43 // pred_fallthru
          _
      $region44: #{tpu_custom_call.1} parent=5 // pred_fallthru
        _
    $region6: #{tpu_custom_call.1} parent=1 // loop_footer
      %s17 = sadd.s32 1, %s13
    $region7: #{tpu_custom_call.1} parent=1 // loop_footer_branch
      %12 = sbr.rel target = $region3
    $region8: #{tpu_custom_call.1} parent=1 // loop_exit
      _
    %382 = vsyncpa [#allocation3], 1
    %s383 = scalar_lea.sflag [#allocation3], 1
    %384 = vsyncpa %s383, 1

// kernel: tpu_custom_call.1
$region0: #{tpu_custom_call.1}
  #allocation0 [shape = 'u32[]', space=smem, size = 0x4, offset = 0x4, fixed_abs, tag = 'smem constant byte address 0x4 - core index']
  #allocation1 [shape = 'u32[144,128]{1,0:T(1,128)}', space=vmem, size = 0x12000, scoped, tag = 'internal scratch']
  %s0 = inlined_call_operand.vmem [shape: s32[16,1], index: 0, kind: input, shape index: {}]
  %s1 = inlined_call_operand.vmem [shape: s32[1,16], index: 1, kind: input, shape index: {}]
  %s2 = inlined_call_operand.vmem [shape: f32[16,32], index: 2, kind: input, shape index: {}]
  %s3 = inlined_call_operand.vmem [shape: f32[32,16], index: 3, kind: input, shape index: {}]
  %s4 = inlined_call_operand.hbm [shape: f32[16,128], index: 4, kind: output, shape index: {}]
  %s5 = sld [smem:[#allocation0]]
  $region49: #{tpu_custom_call.1} parent=0
    _
  %s7 = ssub.s32 1, %s5
  %s8 = scalar_select 0, %s7, %s5
  $region1: #{tpu_custom_call.1} parent=0
    #allocation2 [shape = 'u8[8192]{0}', space=vmem, size = 0x2000, scoped, tag = 'output window, operand 0']
    #allocation3 [shape = 's32[2]{0}', space=sflag, size = 0x8, scoped, tag = 'scoped memory for tpu_custom_call.1']
    %9 = vsyncpa [#allocation3], 0
    %s10 = scalar_lea.sflag [#allocation3], 1
    %11 = vsyncpa %s10, 0
    loop: start=0, step=1, limit=4
    $region2: #{tpu_custom_call.1} parent=1 // loop_pre_header
      _
    $region3: #{tpu_custom_call.1} parent=1 // loop_header
      %s13 = sphi 0, %s17
      %p14 = scmp.ge.s32.totalorder %s13, 4
      %s23 = sphi 0, %s25
      %s26 = sphi 0, %s23
      %s27 = sphi 0, %s26
      %s43 = sphi 0, %s27
      %s47 = sphi 0, %s47
      %s49 = sphi 0, %s47
      %s50 = sphi 0, %s49
      %s64 = sphi 0, %s50
      %s70 = sphi 0, %s72
      %s73 = sphi 0, %s70
      %s74 = sphi 0, %s73
      %s90 = sphi 0, %s74
      %s94 = sphi 0, %s94
      %s96 = sphi 0, %s94
      %s97 = sphi 0, %s96
      %s111 = sphi 0, %s97
      %s117 = sphi 0, %s119
      %s120 = sphi 0, %s117
      %s121 = sphi 0, %s120
      %s137 = sphi 0, %s121
    $region4: #{tpu_custom_call.1} parent=1 // loop_header_branch
      %16 = sbr.rel (%p14) target = $region8
    $region5: #{tpu_custom_call.1} parent=1 // loop_body
      %s18 = ssub.s32 %s13, 1
      %s19 = ssub.s32 %s13, 2
      %s20 = sadd.s32 %s13, 1
      %s21 = ssub.s32 %s13, %s20
      %p22 = scmp.eq.s32.totalorder %s21, 0
      %s24 = sadd.s32 %s23, 1
      %s25 = scalar_select %p22, %s23, %s24
      %p28 = pneg %p22
      %p29 = scmp.eq.s32.totalorder %s13, 1
      %p30 = por %p28, %p29
      %p31 = scmp.ne.s32.totalorder %s23, %s26
      %p32 = scmp.eq.s32.totalorder %s13, 0
      %p33 = por %p31, %p32
      %p34 = scmp.ne.s32.totalorder %s23, %s26
      %p35 = scmp.eq.s32.totalorder %s18, 1
      %p36 = por %p34, %p35
      %p37 = scmp.ne.s32.totalorder %s26, %s27
      %p38 = scmp.eq.s32.totalorder %s18, 0
      %p39 = por %p37, %p38
      %p40 = scmp.ne.s32.totalorder %s26, %s27
      %p41 = scmp.eq.s32.totalorder %s19, 1
      %p42 = por %p40, %p41
      %p44 = scmp.ne.s32.totalorder %s27, %s43
      %p45 = scmp.eq.s32.totalorder %s19, 0
      %p46 = por %p44, %p45
      %s48 = sadd.s32 %s47, 1
      %p51 = scmp.eq.s32.totalorder %s13, 1
      %p52 = scmp.ne.s32.totalorder %s47, %s49
      %p53 = scmp.eq.s32.totalorder %s13, 0
      %p54 = por %p52, %p53
      %p55 = scmp.ne.s32.totalorder %s47, %s49
      %p56 = scmp.eq.s32.totalorder %s18, 1
      %p57 = por %p55, %p56
      %p58 = scmp.ne.s32.totalorder %s49, %s50
      %p59 = scmp.eq.s32.totalorder %s18, 0
      %p60 = por %p58, %p59
      %p61 = scmp.ne.s32.totalorder %s49, %s50
      %p62 = scmp.eq.s32.totalorder %s19, 1
      %p63 = por %p61, %p62
      %p65 = scmp.ne.s32.totalorder %s50, %s64
      %p66 = scmp.eq.s32.totalorder %s19, 0
      %p67 = por %p65, %p66
      %s68 = ssub.s32 %s13, %s20
      %p69 = scmp.eq.s32.totalorder %s68, 0
      %s71 = sadd.s32 %s70, 1
      %s72 = scalar_select %p69, %s70, %s71
      %p75 = pneg %p69
      %p76 = scmp.eq.s32.totalorder %s13, 1
      %p77 = por %p75, %p76
      %p78 = scmp.ne.s32.totalorder %s70, %s73
      %p79 = scmp.eq.s32.totalorder %s13, 0
      %p80 = por %p78, %p79
      %p81 = scmp.ne.s32.totalorder %s70, %s73
      %p82 = scmp.eq.s32.totalorder %s18, 1
      %p83 = por %p81, %p82
      %p84 = scmp.ne.s32.totalorder %s73, %s74
      %p85 = scmp.eq.s32.totalorder %s18, 0
      %p86 = por %p84, %p85
      %p87 = scmp.ne.s32.totalorder %s73, %s74
      %p88 = scmp.eq.s32.totalorder %s19, 1
      %p89 = por %p87, %p88
      %p91 = scmp.ne.s32.totalorder %s74, %s90
      %p92 = scmp.eq.s32.totalorder %s19, 0
      %p93 = por %p91, %p92
      %s95 = sadd.s32 %s94, 1
      %p98 = scmp.eq.s32.totalorder %s13, 1
      %p99 = scmp.ne.s32.totalorder %s94, %s96
      %p100 = scmp.eq.s32.totalorder %s13, 0
      %p101 = por %p99, %p100
      %p102 = scmp.ne.s32.totalorder %s94, %s96
      %p103 = scmp.eq.s32.totalorder %s18, 1
      %p104 = por %p102, %p103
      %p105 = scmp.ne.s32.totalorder %s96, %s97
      %p106 = scmp.eq.s32.totalorder %s18, 0
      %p107 = por %p105, %p106
      %p108 = scmp.ne.s32.totalorder %s96, %s97
      %p109 = scmp.eq.s32.totalorder %s19, 1
      %p110 = por %p108, %p109
      %p112 = scmp.ne.s32.totalorder %s97, %s111
      %p113 = scmp.eq.s32.totalorder %s19, 0
      %p114 = por %p112, %p113
      %s115 = ssub.s32 %s13, %s20
      %p116 = scmp.eq.s32.totalorder %s115, 0
      %s118 = sadd.s32 %s117, 1
      %s119 = scalar_select %p116, %s117, %s118
      %p122 = pneg %p116
      %p123 = scmp.eq.s32.totalorder %s13, 1
      %p124 = por %p122, %p123
      %p125 = scmp.ne.s32.totalorder %s117, %s120
      %p126 = scmp.eq.s32.totalorder %s13, 0
      %p127 = por %p125, %p126
      %p128 = scmp.ne.s32.totalorder %s117, %s120
      %p129 = scmp.eq.s32.totalorder %s18, 1
      %p130 = por %p128, %p129
      %p131 = scmp.ne.s32.totalorder %s120, %s121
      %p132 = scmp.eq.s32.totalorder %s18, 0
      %p133 = por %p131, %p132
      %p134 = scmp.ne.s32.totalorder %s120, %s121
      %p135 = scmp.eq.s32.totalorder %s19, 1
      %p136 = por %p134, %p135
      %p138 = scmp.ne.s32.totalorder %s121, %s137
      %p139 = scmp.eq.s32.totalorder %s19, 0
      %p140 = por %p138, %p139
      %p141 = scmp.le.s32.totalorder 1, %s13
      %p142 = scmp.lt.s32.totalorder %s13, 3
      %p143 = pnand %p141, %p142
      %p144 = pneg %p143
      // Predicated region
      $region9: #{tpu_custom_call.1} parent=5 // pred_check
        _
      $region10: #{tpu_custom_call.1} parent=5 // pred_check_branch
        %146 = sbr.rel (%p143) target = $region12
      $region11: #{tpu_custom_call.1} parent=5 // pred_region
        %s147 = ssub.s32 %s13, 1
        // Predicated region
        $region13: #{tpu_custom_call.1} parent=11 // pred_check
          %p148 = pneg %p60
        $region14: #{tpu_custom_call.1} parent=11 // pred_check_branch
          %150 = sbr.rel (%p148) target = $region16
        $region15: #{tpu_custom_call.1} parent=11 // pred_region
          _
        $region16: #{tpu_custom_call.1} parent=11 // pred_fallthru
          _
        // Predicated region
        $region17: #{tpu_custom_call.1} parent=11 // pred_check
          %p151 = pneg %p107
        $region18: #{tpu_custom_call.1} parent=11 // pred_check_branch
          %153 = sbr.rel (%p151) target = $region20
        $region19: #{tpu_custom_call.1} parent=11 // pred_region
          _
        $region20: #{tpu_custom_call.1} parent=11 // pred_fallthru
          _
      $region12: #{tpu_custom_call.1} parent=5 // pred_fallthru
        _
      %p154 = scmp.lt.s32.totalorder %s13, 2
      // Predicated region
      $region21: #{tpu_custom_call.1} parent=5 // pred_check
        %p155 = pneg %p154
      $region22: #{tpu_custom_call.1} parent=5 // pred_check_branch
        %157 = sbr.rel (%p155) target = $region24
      $region23: #{tpu_custom_call.1} parent=5 // pred_region
        // Predicated region
        $region25: #{tpu_custom_call.1} parent=23 // pred_check
          %p158 = pneg %p33
        $region26: #{tpu_custom_call.1} parent=23 // pred_check_branch
          %160 = sbr.rel (%p158) target = $region28
        $region27: #{tpu_custom_call.1} parent=23 // pred_region
          %p161 = scmp.lt.s32.totalorder %s13, 1
          %s162 = scalar_select %p161, %s13, 1
          %s163 = smul.addr %s162, 8
          %s164 = scalar_lea.vmem %s0, %s163
        $region28: #{tpu_custom_call.1} parent=23 // pred_fallthru
          _
        // Predicated region
        $region29: #{tpu_custom_call.1} parent=23 // pred_check
          %p165 = pneg %p80
        $region30: #{tpu_custom_call.1} parent=23 // pred_check_branch
          %167 = sbr.rel (%p165) target = $region32
        $region31: #{tpu_custom_call.1} parent=23 // pred_region
          %p168 = scmp.lt.s32.totalorder %s13, 1
          %s169 = scalar_select %p168, %s13, 1
          %s170 = smul.addr %s169, 8
          %s171 = scalar_lea.vmem %s2, %s170
        $region32: #{tpu_custom_call.1} parent=23 // pred_fallthru
          _
      $region24: #{tpu_custom_call.1} parent=5 // pred_fallthru
        _
      %p172 = scmp.le.s32.totalorder 1, %s13
      %p173 = scmp.lt.s32.totalorder %s13, 3
      %p174 = pnand %p172, %p173
      %p175 = pneg %p174
      // Predicated region
      $region33: #{tpu_custom_call.1} parent=5 // pred_check
        _
      $region34: #{tpu_custom_call.1} parent=5 // pred_check_branch
        %177 = sbr.rel (%p174) target = $region36
      $region35: #{tpu_custom_call.1} parent=5 // pred_region
        %s178 = ssub.s32 %s13, 1
        %p179 = scmp.lt.s32.totalorder %s18, 1
        %s180 = scalar_select %p179, %s18, 1
        %s181 = smul.addr %s180, 8
        %s182 = scalar_lea.vmem %s0, %s181
        %p183 = pneg %p39
        %p184 = pneg %p36
        %p185 = pneg %p60
        %p186 = pneg %p57
        %p187 = scmp.lt.s32.totalorder %s18, 1
        %s188 = scalar_select %p187, %s18, 1
        %s189 = smul.addr %s188, 8
        %s190 = scalar_lea.vmem %s2, %s189
        %p191 = pneg %p86
        %p192 = pneg %p83
        %p193 = pneg %p107
        %p194 = pneg %p104
        %p195 = pneg %p133
        %p196 = pneg %p130
        %s197 = sand.u32 %s120, 1
        %s198 = scalar_lea.sflag [#allocation3], %s197
        %s199 = sand.u32 %s120, 1
        %s200 = smul.addr %s199, 8
        %s201 = scalar_lea.vmem [#allocation2], %s200
        %p202 = scmp.lt.s32.totalorder %s18, 1
        %s203 = scalar_select %p202, %s18, 1
        %s204 = smul.addr %s203, 8
        %s205 = scalar_lea.vmem %s0, %s204
        %p206 = scmp.lt.s32.totalorder %s18, 1
        %s207 = scalar_select %p206, %s18, 1
        %s208 = smul.addr %s207, 8
        %s209 = scalar_lea.vmem %s2, %s208
        %s210 = smul.u32 %s18, 8
        %v211 = vld [vmem:[%s209] sm:$0xff]
        %v212 = vmul.f32 %v211, 14.285714
        %v213 = vld [vmem:[%s3] sm:$0xff]
        %v214 = vld [vmem:[%s3 + $0x8] sm:$0xff]
        %v215 = vld [vmem:[%s3 + $0x10] sm:$0xff]
        %v216 = vld [vmem:[%s3 + $0x18] sm:$0xff]
        %vm217 = vcmask 261120
        %v219 = vsel %vm217, %v212, 0
        %221 = vmatprep.subr.mxu0 0.0
        %222 = vmatpush1.msra.mxu0 0.0
        %223 = vmatprep.subr.mxu0 0.0
        %224 = vmatpush1.msra.mxu0 0.0
        %225 = vmatprep.subr.mxu0 0.0
        %226 = vmatpush1.msra.mxu0 0.0
        %227 = vmatprep.subr.mxu0 0.0
        %228 = vmatpush1.msra.mxu0 0.0
        %229 = vmatprep.subr.mxu0 0.0
        %230 = vmatpush1.msra.mxu0 0.0
        %231 = vmatprep.subr.mxu0 0.0
        %232 = vmatpush1.msra.mxu0 0.0
        %233 = vmatprep.subr.mxu0 0.0
        %234 = vmatpush1.msra.mxu0 0.0
        %235 = vmatprep.subr.mxu0 0.0
        %236 = vmatpush1.msra.mxu0 0.0
        %237 = vmatprep.subr.mxu0 0.0
        %238 = vmatpush1.msra.mxu0 0.0
        %239 = vmatprep.subr.mxu0 0.0
        %240 = vmatpush1.msra.mxu0 0.0
        %241 = vmatprep.subr.mxu0 0.0
        %242 = vmatpush1.msra.mxu0 0.0
        %243 = vmatprep.subr.mxu0 0.0
        %244 = vmatpush1.msra.mxu0 0.0
        %245 = vmatprep.subr.mxu0 0.0
        %246 = vmatpush1.msra.mxu0 %v216
        %247 = vmatprep.subr.mxu0 0.0
        %248 = vmatpush1.msra.mxu0 %v215
        %249 = vmatprep.subr.mxu0 0.0
        %250 = vmatpush1.msra.mxu0 %v214
        %251 = vmatprep.subr.mxu0 0.0
        %252 = vmatpush1.msra.mxu0 %v213
        %253 = vmatprep.subr.mxu0 0.0
        %254 = vmatpush2.msra.mxu0 0.0
        %255 = vmatprep.subr.mxu0 0.0
        %256 = vmatpush2.msra.mxu0 0.0
        %257 = vmatprep.subr.mxu0 0.0
        %258 = vmatpush2.msra.mxu0 0.0
        %259 = vmatprep.subr.mxu0 0.0
        %260 = vmatpush2.msra.mxu0 0.0
        %261 = vmatprep.subr.mxu0 0.0
        %262 = vmatpush2.msra.mxu0 0.0
        %263 = vmatprep.subr.mxu0 0.0
        %264 = vmatpush2.msra.mxu0 0.0
        %265 = vmatprep.subr.mxu0 0.0
        %266 = vmatpush2.msra.mxu0 0.0
        %267 = vmatprep.subr.mxu0 0.0
        %268 = vmatpush2.msra.mxu0 0.0
        %269 = vmatprep.subr.mxu0 0.0
        %270 = vmatpush2.msra.mxu0 0.0
        %271 = vmatprep.subr.mxu0 0.0
        %272 = vmatpush2.msra.mxu0 0.0
        %273 = vmatprep.subr.mxu0 0.0
        %274 = vmatpush2.msra.mxu0 0.0
        %275 = vmatprep.subr.mxu0 0.0
        %276 = vmatpush2.msra.mxu0 0.0
        %277 = vmatprep.subr.mxu0 0.0
        %278 = vmatpush2.msra.mxu0 0.0
        %279 = vmatprep.subr.mxu0 0.0
        %280 = vmatpush2.msra.mxu0 0.0
        %281 = vmatprep.subr.mxu0 0.0
        %282 = vmatpush2.msra.mxu0 0.0
        %283 = vmatprep.subr.mxu0 0.0
        %284 = vmatpush2.msra.mxu0 0.0
        %285 = vmatprep.mubr.f32.mxu0 0.0
        %286 = vmatmul.mubr.f32.gmra.mxu0 %v219
        %v287 = vpop.f32.mrf.mxu0
        %v288 = vadd.f32 0.0, %v287
        %v289 = vpop.f32.mrf.mxu0
        %290 = vdwg.mxu0
        %v291 = vlaneseq
        %v292 = vshrl.u32 %v291, 7
        %v293 = vstv %s210
        %v294 = vadd.s32 %v293, %v292
        %v295 = vlaneseq
        %v296 = vand.u32 %v295, 127
        %vm297 = vcmp.ne.s32.totalorder %v294, %v296
        %v298 = vld [vmem:[%s205] sm:$0xff]
        %v299 = vld [vmem:[%s1] sm:$0x1]
        %300 = vset.pattern.permute.xlu0 0
        %301 = vperm.xlu0 %300, %v298
        %v302 = vpop.permute.xlu0 %301
        %v303 = vlaneseq
        %v304 = vshrl.u32 %v303, 7
        %v305 = vsub.s32 0, %v304
        %v306 = vrot.slane %v299, %v305
        %vm307 = vcmp.eq.s32.totalorder %v302, %v306
        %vm308 = vmand %vm307, %vm297
        %vm309 = vcmp.lt.s32.totalorder %v294, 16
        %vm310 = vcmask 130048
        %v311 = vsel %vm310, %v288, -inf
        %312 = vmax.xlane.f32.xlu0 %v311
        %v313 = vpop.xlane.xlu0 %312
        %v314 = vsub.f32 %v288, %v313
        %v315 = vmul.f32 %v314, 1.442695
        %v316 = vpow.pop %v315
        %v317 = vsel %vm297, %v316, 0.0
        %v318 = vsel %vm310, %v317, 0.0
        %319 = vadd.xlane.f32.xlu0 %v318
        %v320 = vpop.xlane.xlu0 %319
        %v321 = vsel %vm308, %v314, 0.0
        %v322 = vsel %vm310, %v321, 0.0
        %323 = vadd.xlane.f32.xlu0 %v322
        %v324 = vpop.xlane.xlu0 %323
        %v325 = vsel %vm308, 1.0, 0.0
        %v326 = vsel %vm310, %v325, 0.0
        %327 = vadd.xlane.f32.xlu0 %v326
        %v328 = vpop.xlane.xlu0 %327
        %v329 = vlog2.pop %v320
        %v330 = vmul.f32 %v329, 0.6931472
        %v331 = vmul.f32 %v328, %v330
        %v332 = vsub.f32 %v324, %v331
        %v333 = vrcp.pop %v328
        %v334 = vmul.f32 %v332, %v333
        %v335 = vmul.f32 %v334, -1.0
        %v336 = vsel %vm309, %v335, 0.0
        %vm337 = vcmask 7168
        %v338 = vsel %vm337, %v336, 0.0
        %339 = vadd.xlane.f32.xlu0 %v338
        %v340 = vpop.xlane.xlu0 %339
        %v341 = vrot.slane %v340, 4
        %v342 = vadd.f32 %v340, %v341
        %v343 = vrot.slane %v342, 2
        %v344 = vadd.f32 %v342, %v343
        %v345 = vrot.slane %v344, 1
        %v346 = vadd.f32 %v344, %v345
        %s347 = vtos %v346
        %v348 = vstv %s347
        %349 = vst [vmem:[%s201] sm:$0xff] %v348
        %s350 = sand.u32 %s120, 1
        %s351 = scalar_lea.sflag [#allocation3], %s350
        %s352 = sand.u32 %s120, 1
        %s353 = smul.addr %s352, 8
        %s354 = scalar_lea.vmem [#allocation2], %s353
        // Predicated region
        $region37: #{tpu_custom_call.1} parent=35 // pred_check
          %p355 = pneg %p130
        $region38: #{tpu_custom_call.1} parent=35 // pred_check_branch
          %357 = sbr.rel (%p355) target = $region40
        $region39: #{tpu_custom_call.1} parent=35 // pred_region
          %s359 = ssub.s32 128, 128
          %360 = vsyncadd %s351, %s359
          %s361 = smul.addr %s18, 128
          %s362 = scalar_lea.hbm %s4, %s361
          %s364 = sshll.u32 %s354, 4
          %s365 = int_to_ptr.vmem [resolvable:$true] %s364
          %367 = dma.vmem_to_hbm [thread:$0]  %s365, 128, %s362, %s351
        $region40: #{tpu_custom_call.1} parent=35 // pred_fallthru
          _
      $region36: #{tpu_custom_call.1} parent=5 // pred_fallthru
        _
      %p368 = scmp.le.s32.totalorder 2, %s13
      // Predicated region
      $region41: #{tpu_custom_call.1} parent=5 // pred_check
        %p369 = pneg %p368
      $region42: #{tpu_custom_call.1} parent=5 // pred_check_branch
        %371 = sbr.rel (%p369) target = $region44
      $region43: #{tpu_custom_call.1} parent=5 // pred_region
        %s372 = ssub.s32 %s13, 2
        // Predicated region
        $region45: #{tpu_custom_call.1} parent=43 // pred_check
          %p373 = pneg %p136
        $region46: #{tpu_custom_call.1} parent=43 // pred_check_branch
          %375 = sbr.rel (%p373) target = $region48
        $region47: #{tpu_custom_call.1} parent=43 // pred_region
          %s376 = sand.u32 %s121, 1
          %s377 = scalar_lea.sflag [#allocation3], %s376
          %s378 = sand.u32 %s121, 1
          %s379 = smul.addr %s378, 8
          %s380 = scalar_lea.vmem [#allocation2], %s379
          %381 = dma.done %s377, 128
        $region48: #{tpu_custom_call.1} parent=43 // pred_fallthru
          _
      $region44: #{tpu_custom_call.1} parent=5 // pred_fallthru
        _
    $region6: #{tpu_custom_call.1} parent=1 // loop_footer
      %s17 = sadd.s32 1, %s13
    $region7: #{tpu_custom_call.1} parent=1 // loop_footer_branch
      %12 = sbr.rel target = $region3
    $region8: #{tpu_custom_call.1} parent=1 // loop_exit
      _
    %382 = vsyncpa [#allocation3], 1
    %s383 = scalar_lea.sflag [#allocation3], 1
    %384 = vsyncpa %s383, 1

</llo_original>
